<compile_context>
chip_gen: v5e
topology: v5e:2x2
jax: 0.10.0
libtpu: 0.0.40
codegen_flags: <defaults>
</compile_context>

<pallas_src>
import jax
import jax.numpy as jnp
from jax.experimental import pallas as pl
from jax.experimental.pallas import tpu as pltpu


_LANE = 128
_SUBLANE = 8


def _round_up(x: int, m: int) -> int:
    return ((x + m - 1) // m) * m


def _make_mse_partial_kernel(rows: int, row_tile: int, tiles_per_split: int):
    """Kernel accumulating per-split sum-of-squared-diff into an (8,128) slab."""

    def kernel(x_ref, t_ref, o_ref):
        c = pl.program_id(0)          # split (TensorCore) index  -- parallel
        i = pl.program_id(1)          # tile index within split   -- arbitrary

        @pl.when(i == 0)
        def _():
            o_ref[...] = jnp.zeros_like(o_ref)

        x = x_ref[...].astype(jnp.float32)
        t = t_ref[...].astype(jnp.float32)
        d = x - t

        # Mask rows beyond the valid slab (partial final tile, or a fully
        # out-of-range tile when the tile count doesn't split evenly).
        tile_id = c * tiles_per_split + i
        row_idx = tile_id * row_tile + jax.lax.broadcasted_iota(
            jnp.int32, (row_tile, _LANE), 0)
        d = jnp.where(row_idx < rows, d, 0.0)

        sq = d * d
        # Fold the tile down to one (8,128) slab: pure elementwise vreg adds
        # (no per-iteration cross-lane reduce, no loop-carried scalar).
        o_ref[...] += sq.reshape(row_tile // _SUBLANE, _SUBLANE, _LANE).sum(axis=0)

    return kernel


def content_loss_forward(x, target, *, max_row_tile: int = 2048):
    """Returns (loss, passthrough_input) — mirrors ContentLoss.forward.

    loss == mean((x - target)**2), computed in f32 regardless of input dtype.
    """
    assert x.shape == target.shape, "input/target shape mismatch"
    total = int(x.size)

    # Flatten to a lane-dense 2D slab in the NATIVE dtype (no astype copy).
    flat_x = x.reshape(-1)
    flat_t = target.reshape(-1)
    pad = (-total) % _LANE
    if pad:
        # Minimal pad only when element count isn't a multiple of 128; the
        # zero padding (in BOTH arrays) contributes 0 to the SSE.
        flat_x = jnp.pad(flat_x, (0, pad))
        flat_t = jnp.pad(flat_t, (0, pad))
    rows = (total + pad) // _LANE
    x2d = flat_x.reshape(rows, _LANE)
    t2d = flat_t.reshape(rows, _LANE)

    # Large tiles (~1 MiB f32 per input at the default 2048 rows); clamp to the
    # data size and keep a multiple of 8 sublanes.
    row_tile = max(_SUBLANE, min(int(max_row_tile), _round_up(rows, _SUBLANE)))
    row_tile = _round_up(row_tile, _SUBLANE)

    n_tiles = pl.cdiv(rows, row_tile)
    n_split = 2 if n_tiles >= 2 else 1            # 2-way split for v7x megacore
    tiles_per_split = pl.cdiv(n_tiles, n_split)

    def in_index_map(c, i):
        # Clamp so the DMA never targets a block past the array end; the
        # in-kernel row mask zeroes any duplicated / out-of-range tile.
        t = c * tiles_per_split + i
        return (jnp.minimum(t, n_tiles - 1), 0)

    kernel = _make_mse_partial_kernel(rows, row_tile, tiles_per_split)

    partials = pl.pallas_call(
        kernel,
        out_shape=jax.ShapeDtypeStruct((n_split, _SUBLANE, _LANE), jnp.float32),
        grid_spec=pltpu.PrefetchScalarGridSpec(
            num_scalar_prefetch=0,
            grid=(n_split, tiles_per_split),
            in_specs=[
                pl.BlockSpec((row_tile, _LANE), in_index_map),
                pl.BlockSpec((row_tile, _LANE), in_index_map),
            ],
            # Per-split (8,128) partial-sum slab, resident across the
            # reduction axis (same block for every i).
            out_specs=pl.BlockSpec((None, _SUBLANE, _LANE),
                                   lambda c, i: (c, 0, 0)),
        ),
        compiler_params=pltpu.CompilerParams(
            dimension_semantics=("parallel", "arbitrary"),
        ),
    )(x2d, t2d)

    # One tiny final reduction + scale outside the kernel.
    loss = jnp.sum(partials) * (1.0 / float(total))

    # ContentLoss.forward returns the input unchanged (loss is a side value).
    return loss, x


class ContentLoss:
    """Thin JAX mirror of the PyTorch module: stores a detached target,
    computes self.loss as a side effect, returns the input."""

    def __init__(self, target):
        self.target = jax.lax.stop_gradient(target)
        self.loss = None

    def __call__(self, x):
        loss, out = content_loss_forward(x, self.target)
        self.loss = loss
        return out


def _check(shape, key, **kwargs):
    k1, k2 = jax.random.split(key)
    x = jax.random.normal(k1, shape, dtype=jnp.float32)
    t = jax.random.normal(k2, shape, dtype=jnp.float32)
    loss, out = content_loss_forward(x, t, **kwargs)
    loss = jax.block_until_ready(loss)
    out = jax.block_until_ready(out)
    ref = jnp.mean((x - t) ** 2)
    assert jnp.allclose(loss, ref, rtol=1e-5, atol=1e-6), (shape, loss, ref)
    assert jnp.array_equal(out, x), "forward must pass input through unchanged"
    return x, t


if __name__ == "__main__":
    key = jax.random.PRNGKey(0)
    k_main, k_b, k_c = jax.random.split(key, 3)

    # Primary case: small NCHW feature maps, as in conv-feature content loss.
    shape = (2, 4, 16, 16)
    x, target = _check(shape, k_main)

    # Module-style usage on the primary case.
    module = ContentLoss(target)
    out = jax.block_until_ready(module(x))
    loss = jax.block_until_ready(module.loss)
    ref = jnp.mean((x - target) ** 2)
    assert jnp.allclose(loss, ref, rtol=1e-5, atol=1e-6), (loss, ref)
    assert jnp.array_equal(out, x)

    # Ragged element count (not a multiple of 128) -> pad-to-lane path.
    _check((1, 3, 45, 7), k_b)

    # Multi-tile + 2-way split + partial last tile (small row_tile to exercise
    # the masked / clamped paths at a small size).
    _check((2, 8, 40, 48), k_c, max_row_tile=64)

    print("KERNEL_OK")
</pallas_src>

<mosaic_0001>
module attributes {stable_mosaic.version = 11 : i64} {
  func.func @kernel(%arg0: i32, %arg1: i32, %arg2: memref<16x128xf32, #tpu.memory_space<vmem>>, %arg3: memref<16x128xf32, #tpu.memory_space<vmem>>, %arg4: memref<1x8x128xf32, #tpu.memory_space<vmem>>) attributes {dimension_semantics = [#tpu.dimension_semantics<parallel>, #tpu.dimension_semantics<arbitrary>], iteration_bounds = array<i64: 1, 1>, scalar_prefetch = 0 : i64, scratch_operands = 0 : i64, tpu.core_type = #tpu.core_type<tc>, window_params = [{transform_indices = @transform_0, window_bounds = array<i64: 16, 128>}, {transform_indices = @transform_1, window_bounds = array<i64: 16, 128>}, {transform_indices = @transform_2, window_bounds = array<i64: 1, 8, 128>}]} {
    %c0_i32 = arith.constant 0 : i32
    %0 = arith.cmpi eq, %arg1, %c0_i32 : i32
    %1 = arith.extui %0 : i1 to i32
    %c0_i32_0 = arith.constant 0 : i32
    %2 = arith.cmpi ne, %1, %c0_i32_0 : i32
    scf.if %2 {
      %cst_12 = arith.constant 0.000000e+00 : f32
      %25 = vector.broadcast %cst_12 : f32 to vector<8x128xf32>
      %c0_13 = arith.constant 0 : index
      %c0_14 = arith.constant 0 : index
      %c0_15 = arith.constant 0 : index
      %26 = vector.load %arg4[%c0_13, %c0_14, %c0_15] : memref<1x8x128xf32, #tpu.memory_space<vmem>>, vector<1x8x128xf32>
      %27 = vector.shape_cast %26 : vector<1x8x128xf32> to vector<8x128xf32>
      %28 = vector.shape_cast %25 : vector<8x128xf32> to vector<1x8x128xf32>
      tpu.vector_store %arg4[%c0_13, %c0_14, %c0_15], %28 {strides = array<i32>} : memref<1x8x128xf32, #tpu.memory_space<vmem>>, vector<1x8x128xf32>,
    } else {
    }
    %c0 = arith.constant 0 : index
    %c0_1 = arith.constant 0 : index
    %3 = vector.load %arg2[%c0, %c0_1] : memref<16x128xf32, #tpu.memory_space<vmem>>, vector<16x128xf32>
    %c0_2 = arith.constant 0 : index
    %c0_3 = arith.constant 0 : index
    %4 = vector.load %arg3[%c0_2, %c0_3] : memref<16x128xf32, #tpu.memory_space<vmem>>, vector<16x128xf32>
    %5 = arith.subf %3, %4 : vector<16x128xf32>
    %c1_i32 = arith.constant 1 : i32
    %6 = arith.muli %arg0, %c1_i32 : i32
    %7 = arith.addi %6, %arg1 : i32
    %c16_i32 = arith.constant 16 : i32
    %8 = arith.muli %7, %c16_i32 : i32
    %9 = tpu.iota {dimensions = array<i32: 0>} : vector<16x128xi32>
    %10 = vector.broadcast %8 : i32 to vector<16x128xi32>
    %11 = arith.addi %10, %9 : vector<16x128xi32>
    %c16_i32_4 = arith.constant 16 : i32
    %12 = vector.broadcast %c16_i32_4 : i32 to vector<16x128xi32>
    %13 = arith.cmpi slt, %11, %12 : vector<16x128xi32>
    %cst = arith.constant 0.000000e+00 : f32
    %14 = vector.broadcast %cst : f32 to vector<16x128xf32>
    %15 = arith.select %13, %5, %14 : vector<16x128xi1>, vector<16x128xf32>
    %16 = arith.mulf %15, %15 : vector<16x128xf32>
    %c0_5 = arith.constant 0 : index
    %c0_6 = arith.constant 0 : index
    %c0_7 = arith.constant 0 : index
    %17 = vector.load %arg4[%c0_5, %c0_6, %c0_7] : memref<1x8x128xf32, #tpu.memory_space<vmem>>, vector<1x8x128xf32>
    %18 = vector.shape_cast %17 : vector<1x8x128xf32> to vector<8x128xf32>
    %19 = vector.shape_cast %16 : vector<16x128xf32> to vector<2x8x128xf32>
    %cst_8 = arith.constant dense<0.000000e+00> : vector<8x128xf32>
    %20 = vector.multi_reduction <add>, %19, %cst_8 [0] : vector<2x8x128xf32> to vector<8x128xf32>
    %21 = arith.addf %18, %20 : vector<8x128xf32>
    %c0_9 = arith.constant 0 : index
    %c0_10 = arith.constant 0 : index
    %c0_11 = arith.constant 0 : index
    %22 = vector.load %arg4[%c0_9, %c0_10, %c0_11] : memref<1x8x128xf32, #tpu.memory_space<vmem>>, vector<1x8x128xf32>
    %23 = vector.shape_cast %22 : vector<1x8x128xf32> to vector<8x128xf32>
    %24 = vector.shape_cast %21 : vector<8x128xf32> to vector<1x8x128xf32>
    tpu.vector_store %arg4[%c0_9, %c0_10, %c0_11], %24 {strides = array<i32>} : memref<1x8x128xf32, #tpu.memory_space<vmem>>, vector<1x8x128xf32>,
    return
  }
  func.func @transform_0(%arg0: i32, %arg1: i32) -> (i32, i32) {
    %c1_i32 = arith.constant 1 : i32
    %0 = arith.muli %arg0, %c1_i32 : i32
    %1 = arith.addi %0, %arg1 : i32
    %c0_i32 = arith.constant 0 : i32
    %2 = arith.minsi %1, %c0_i32 : i32
    %c0_i32_0 = arith.constant 0 : i32
    %c0_i32_1 = arith.constant 0 : i32
    return %2, %c0_i32_0 : i32, i32
  }
  func.func @transform_1(%arg0: i32, %arg1: i32) -> (i32, i32) {
    %c1_i32 = arith.constant 1 : i32
    %0 = arith.muli %arg0, %c1_i32 : i32
    %1 = arith.addi %0, %arg1 : i32
    %c0_i32 = arith.constant 0 : i32
    %2 = arith.minsi %1, %c0_i32 : i32
    %c0_i32_0 = arith.constant 0 : i32
    %c0_i32_1 = arith.constant 0 : i32
    return %2, %c0_i32_0 : i32, i32
  }
  func.func @transform_2(%arg0: i32, %arg1: i32) -> (i32, i32, i32) {
    %c0_i32 = arith.constant 0 : i32
    %c0_i32_0 = arith.constant 0 : i32
    %c0_i32_1 = arith.constant 0 : i32
    return %arg0, %c0_i32, %c0_i32_0 : i32, i32, i32
  }
}

</mosaic_0001>

<llo_original>
// kernel: tpu_custom_call.1
$region0: #{tpu_custom_call.1}
  #allocation0 [shape = 'u32[]', space=smem, size = 0x4, offset = 0x4, fixed_abs, tag = 'smem constant byte address 0x4 - core index']
  #allocation1 [shape = 'u32[72,128]{1,0:T(1,128)}', space=vmem, size = 0x9000, scoped, tag = 'internal scratch']
  %s0 = inlined_call_operand.hbm [shape: f32[16,128], index: 0, kind: input, shape index: {}]
  %s1 = inlined_call_operand.hbm [shape: f32[16,128], index: 1, kind: input, shape index: {}]
  %s2 = inlined_call_operand.hbm [shape: f32[1,8,128], index: 2, kind: output, shape index: {}]
  %s3 = sld [smem:[#allocation0]]
  $region30: #{tpu_custom_call.1} parent=0
    _
  %s5 = ssub.s32 1, %s3
  %s6 = scalar_select 0, %s5, %s3
  $region1: #{tpu_custom_call.1} parent=0
    #allocation2 [shape = 'u8[8192]{0}', space=vmem, size = 0x2000, scoped, tag = 'input window, operand 0, single buffered']
    #allocation3 [shape = 's32[1]{0}', space=sflag, size = 0x4, scoped, tag = 'scoped memory for tpu_custom_call.1']
    #allocation4 [shape = 's32[1]{0}', space=sflag, size = 0x4, scoped, tag = 'scoped memory for tpu_custom_call.1']
    #allocation5 [shape = 'u8[8192]{0}', space=vmem, size = 0x2000, scoped, tag = 'input window, operand 1, single buffered']
    #allocation6 [shape = 's32[1]{0}', space=sflag, size = 0x4, scoped, tag = 'scoped memory for tpu_custom_call.1']
    #allocation7 [shape = 'u8[4096]{0}', space=vmem, size = 0x1000, scoped, tag = 'output window, operand 0, single buffered']
    %7 = vsyncpa [#allocation3], 0
    %8 = vsyncpa [#allocation6], 0
    %9 = vsyncpa [#allocation4], 0
    // Predicated region
    $region2: #{tpu_custom_call.1} parent=1 // pred_check
      _
    $region3: #{tpu_custom_call.1} parent=1 // pred_check_branch
      %11 = sbr.rel (0) target = $region5
    $region4: #{tpu_custom_call.1} parent=1 // pred_region
      %s12 = sadd.s32 0, 0
      %p13 = scmp.lt.s32.totalorder %s12, 0
      %s14 = scalar_select %p13, %s12, 0
      %s15 = smul.u32 2, %s14
      %17 = vsyncadd [#allocation3], 0
      %s18 = smul.addr %s15, 8
      %s19 = scalar_lea.hbm %s0, %s18
      %s20 = sshll.u32 %s19, 4
      %s21 = int_to_ptr.hbm [resolvable:$true] %s20
      %s22 = sshll.u32 [#allocation2], 4
      %s23 = int_to_ptr.vmem [resolvable:$true] %s22
      %28 = dma.hbm_to_vmem [thread:$0]  %s21, 256, %s23, [#allocation3], 128, 128, 8
    $region5: #{tpu_custom_call.1} parent=1 // pred_fallthru
      _
    // Predicated region
    $region6: #{tpu_custom_call.1} parent=1 // pred_check
      _
    $region7: #{tpu_custom_call.1} parent=1 // pred_check_branch
      %30 = sbr.rel (0) target = $region9
    $region8: #{tpu_custom_call.1} parent=1 // pred_region
      %s31 = sadd.s32 0, 0
      %p32 = scmp.lt.s32.totalorder %s31, 0
      %s33 = scalar_select %p32, %s31, 0
      %s34 = smul.u32 2, %s33
      %36 = vsyncadd [#allocation6], 0
      %s37 = smul.addr %s34, 8
      %s38 = scalar_lea.hbm %s1, %s37
      %s39 = sshll.u32 %s38, 4
      %s40 = int_to_ptr.hbm [resolvable:$true] %s39
      %s41 = sshll.u32 [#allocation5], 4
      %s42 = int_to_ptr.vmem [resolvable:$true] %s41
      %47 = dma.hbm_to_vmem [thread:$0]  %s40, 256, %s42, [#allocation6], 128, 128, 8
    $region9: #{tpu_custom_call.1} parent=1 // pred_fallthru
      _
    // Predicated region
    $region10: #{tpu_custom_call.1} parent=1 // pred_check
      _
    $region11: #{tpu_custom_call.1} parent=1 // pred_check_branch
      %49 = sbr.rel (0) target = $region13
    $region12: #{tpu_custom_call.1} parent=1 // pred_region
      %51 = dma.done [#allocation3], 256
    $region13: #{tpu_custom_call.1} parent=1 // pred_fallthru
      _
    // Predicated region
    $region14: #{tpu_custom_call.1} parent=1 // pred_check
      _
    $region15: #{tpu_custom_call.1} parent=1 // pred_check_branch
      %53 = sbr.rel (0) target = $region17
    $region16: #{tpu_custom_call.1} parent=1 // pred_region
      %55 = dma.done [#allocation6], 256
    $region17: #{tpu_custom_call.1} parent=1 // pred_fallthru
      _
    %s56 = sadd.s32 0, 0
    %p57 = scmp.lt.s32.totalorder %s56, 0
    %s58 = scalar_select %p57, %s56, 0
    %s59 = smul.u32 2, %s58
    %s60 = sadd.s32 0, 0
    %p61 = scmp.lt.s32.totalorder %s60, 0
    %s62 = scalar_select %p61, %s60, 0
    %s63 = smul.u32 2, %s62
    %p64 = scmp.eq.s32.totalorder 0, 0
    // Predicated region
    $region18: #{tpu_custom_call.1} parent=1 // pred_check
      %p65 = pneg %p64
    $region19: #{tpu_custom_call.1} parent=1 // pred_check_branch
      %67 = sbr.rel (%p65) target = $region21
    $region20: #{tpu_custom_call.1} parent=1 // pred_region
      %68 = vst [vmem:[#allocation7] sm:$0xff] 0.0
    $region21: #{tpu_custom_call.1} parent=1 // pred_fallthru
      _
    %v69 = vld [vmem:[#allocation2] sm:$0xff]
    %v70 = vld [vmem:[#allocation2 + $0x8] sm:$0xff]
    %v71 = vld [vmem:[#allocation5] sm:$0xff]
    %v72 = vld [vmem:[#allocation5 + $0x8] sm:$0xff]
    %v73 = vsub.f32 %v69, %v71
    %v74 = vsub.f32 %v70, %v72
    %s75 = sadd.s32 0, 0
    %s76 = smul.u32 %s75, 16
    %v77 = vlaneseq
    %v78 = vshrl.u32 %v77, 7
    %v79 = vadd.s32 %v78, 8
    %v80 = vstv %s76
    %v81 = vadd.s32 %v80, %v78
    %v82 = vadd.s32 %v80, %v79
    %vm83 = vcmp.lt.s32.totalorder %v81, 16
    %vm84 = vcmp.lt.s32.totalorder %v82, 16
    %v85 = vsel %vm83, %v73, 0.0
    %v86 = vsel %vm84, %v74, 0.0
    %v87 = vmul.f32 %v85, %v85
    %v88 = vmul.f32 %v86, %v86
    %v89 = vld [vmem:[#allocation7] sm:$0xff]
    %v90 = vadd.f32 %v87, %v88
    %v91 = vadd.f32 %v89, %v90
    %92 = vst [vmem:[#allocation7] sm:$0xff] %v91
    // Predicated region
    $region22: #{tpu_custom_call.1} parent=1 // pred_check
      _
    $region23: #{tpu_custom_call.1} parent=1 // pred_check_branch
      %94 = sbr.rel (0) target = $region25
    $region24: #{tpu_custom_call.1} parent=1 // pred_region
      %96 = vsyncadd [#allocation4], 0
      %s98 = sshll.u32 [#allocation7], 4
      %s99 = int_to_ptr.vmem [resolvable:$true] %s98
      %s100 = sshll.u32 %s2, 4
      %s101 = int_to_ptr.hbm [resolvable:$true] %s100
      %103 = dma.vmem_to_hbm [thread:$0]  %s99, 128, %s101, [#allocation4]
    $region25: #{tpu_custom_call.1} parent=1 // pred_fallthru
      _
    // Predicated region
    $region26: #{tpu_custom_call.1} parent=1 // pred_check
      _
    $region27: #{tpu_custom_call.1} parent=1 // pred_check_branch
      %105 = sbr.rel (0) target = $region29
    $region28: #{tpu_custom_call.1} parent=1 // pred_region
      %107 = dma.done [#allocation4], 128
    $region29: #{tpu_custom_call.1} parent=1 // pred_fallthru
      _
    %108 = vsyncpa [#allocation3], 1
    %109 = vsyncpa [#allocation6], 1
    %110 = vsyncpa [#allocation4], 1

</llo_original>
